<compile_context>
chip_gen: v5e
topology: v5e:2x2
jax: 0.10.0
libtpu: 0.0.40
codegen_flags: <defaults>
</compile_context>

<pallas_src>
import math
import functools

import jax
import jax.numpy as jnp
from jax.experimental import pallas as pl
from jax.experimental.pallas import tpu as pltpu


def _round_up(n, m):
    return ((n + m - 1) // m) * m


def _fnn_kernel(softmax, outd, n_linear, x_ref, *refs):
    """Kernel body.

    refs = (w1, b1, w2, b2, ..., w_out, b_out, out_ref)
    Weights already transposed + zero-padded to [in_p, out_p] (128-lane dense);
    biases are [1, out_p] in f32.  n_linear = number of Linear layers.
    """
    out_ref = refs[-1]
    params = refs[:-1]

    h = x_ref[...].astype(jnp.float32)

    # Hidden layers: Linear -> ReLU.  Zero padding is preserved: padded inputs
    # are 0, padded weight rows/cols are 0, padded biases are 0, ReLU(0)=0.
    for i in range(n_linear - 1):
        w = params[2 * i][...]
        b = params[2 * i + 1][...].astype(jnp.float32)
        h = jnp.dot(h.astype(w.dtype), w, preferred_element_type=jnp.float32) + b
        h = jnp.maximum(h, 0.0)

    # Output layer: Linear (no activation).
    w = params[2 * (n_linear - 1)][...]
    b = params[2 * (n_linear - 1) + 1][...].astype(jnp.float32)
    y = jnp.dot(h.astype(w.dtype), w, preferred_element_type=jnp.float32) + b

    if softmax:
        # Mask the zero-padded lanes to -inf so they contribute exp(..)=0.
        col = jax.lax.broadcasted_iota(jnp.int32, y.shape, dimension=1)
        y = jnp.where(col < outd, y, -jnp.inf)
        m = jnp.max(y, axis=-1, keepdims=True)
        e = jnp.exp(y - m)
        denom = jnp.sum(e, axis=-1, keepdims=True)
        y = e * pl.reciprocal(denom, approx=True)

    out_ref[...] = y.astype(out_ref.dtype)


def prepare_fnn_params(weights, biases, compute_dtype=jnp.float32):
    """One-time parameter prep (call once, outside the per-step path).

    weights: list of PyTorch-layout arrays [out_features, in_features]
    biases:  list of arrays [out_features]
    Returns a flat list [w1, b1, w2, b2, ...] with weights transposed to
    [in, out] and zero-padded so every matmul operand is (8,128)-tile aligned:
      - first-layer K dim padded to a multiple of 8
      - all other dims padded to multiples of 128
    compute_dtype controls the matmul operand dtype (e.g. jnp.bfloat16 on
    v6e/v7x for large problems); biases stay f32.
    """
    assert len(weights) == len(biases)
    params = []
    for idx, (w, b) in enumerate(zip(weights, biases)):
        w = jnp.asarray(w, jnp.float32).T          # [in, out]
        b = jnp.asarray(b, jnp.float32)
        fan_in, fan_out = w.shape
        in_p = _round_up(fan_in, 8) if idx == 0 else _round_up(fan_in, 128)
        out_p = _round_up(fan_out, 128)
        wp = jnp.zeros((in_p, out_p), compute_dtype)
        wp = wp.at[:fan_in, :fan_out].set(w.astype(compute_dtype))
        bp = jnp.zeros((1, out_p), jnp.float32)
        bp = bp.at[0, :fan_out].set(b)
        params.append(wp)
        params.append(bp)
    return params


def fnn_forward(x, params, outd, *, softmax=False, max_tile_b=512):
    """Run the FNN forward pass in a single Pallas TPU kernel.

    x:      [batch, ind]
    params: output of prepare_fnn_params (padded, transposed)
    outd:   true (unpadded) output feature count
    """
    batch, ind = x.shape
    n_linear = len(params) // 2
    ind_p = params[0].shape[0]
    outd_p = params[-1].shape[1]

    # Batch tiling: single grid step for small batches, tiled + double-buffered
    # for large ones.  Tile is small enough for v7x's 64 MiB VMEM.
    tile_b = min(max_tile_b, _round_up(batch, 8))
    batch_p = _round_up(batch, tile_b)

    # Zero-pad x to [batch_p, ind_p] (zeros are semantically inert).
    if (batch_p, ind_p) != (batch, ind):
        xp = jnp.zeros((batch_p, ind_p), x.dtype).at[:batch, :ind].set(x)
    else:
        xp = x

    grid = (batch_p // tile_b,)

    in_specs = [pl.BlockSpec((tile_b, ind_p), lambda i: (i, 0))]
    for p in params:
        # Whole weight / bias resident in VMEM across all grid steps.
        in_specs.append(pl.BlockSpec(p.shape, lambda i: (0, 0)))
    out_spec = pl.BlockSpec((tile_b, outd_p), lambda i: (i, 0))

    kernel = functools.partial(_fnn_kernel, softmax, outd, n_linear)

    out = pl.pallas_call(
        kernel,
        out_shape=jax.ShapeDtypeStruct((batch_p, outd_p), x.dtype),
        grid=grid,
        in_specs=in_specs,
        out_specs=out_spec,
        compiler_params=pltpu.CompilerParams(
            dimension_semantics=("parallel",),
            vmem_limit_bytes=32 * 1024 * 1024,
        ),
    )(xp, *params)

    return out[:batch, :outd]


def init_fnn_params(key, ind, outd, layers, width):
    """Deterministic parameter init matching the module's shapes.

    Weights: U(-1/sqrt(fan_in), 1/sqrt(fan_in)); biases: 0.
    Returns (weights, biases) in PyTorch layout [out_features, in_features].
    """
    dims = []
    if layers > 1:
        dims.append((ind, width))                  # LinM1
        for _ in range(2, layers):
            dims.append((width, width))            # LinM2..LinM{layers-1}
        dims.append((width, outd))                 # LinMout
    else:
        dims.append((ind, outd))                   # LinMout only

    weights, biases = [], []
    for (fan_in, fan_out) in dims:
        key, sub = jax.random.split(key)
        bound = 1.0 / math.sqrt(fan_in)
        w = jax.random.uniform(sub, (fan_out, fan_in), jnp.float32,
                               minval=-bound, maxval=bound)
        weights.append(w)
        biases.append(jnp.zeros((fan_out,), jnp.float32))
    return weights, biases


if __name__ == "__main__":
    # Module defaults: ind=2, outd=2, layers=2, width=50, relu, softmax=False
    ind, outd, layers, width = 2, 2, 2, 50
    batch = 8

    key = jax.random.PRNGKey(0)
    key, xkey = jax.random.split(key)
    x = jax.random.normal(xkey, (batch, ind), jnp.float32)

    weights, biases = init_fnn_params(key, ind, outd, layers, width)
    params = prepare_fnn_params(weights, biases)        # one-time prep

    # Pure-JAX reference of the same forward semantics.
    h = x
    for i in range(layers - 1):
        h = jnp.maximum(h @ weights[i].T + biases[i], 0.0)
    ref = h @ weights[-1].T + biases[-1]

    # No-softmax path.
    out = jax.block_until_ready(fnn_forward(x, params, outd, softmax=False))
    assert out.shape == (batch, outd)
    assert jnp.allclose(out, ref, atol=1e-5, rtol=1e-5)

    # Softmax path (approx reciprocal -> slightly looser tolerance).
    out_s = jax.block_until_ready(fnn_forward(x, params, outd, softmax=True))
    ref_s = jax.nn.softmax(ref, axis=-1)
    assert out_s.shape == (batch, outd)
    assert jnp.allclose(out_s, ref_s, atol=2e-3, rtol=2e-3)

    print("KERNEL_OK")
</pallas_src>

<mosaic_0001>
module attributes {stable_mosaic.version = 11 : i64} {
  func.func @_fnn_kernel(%arg0: i32, %arg1: memref<8x8xf32, #tpu.memory_space<vmem>>, %arg2: memref<8x128xf32, #tpu.memory_space<vmem>>, %arg3: memref<1x128xf32, #tpu.memory_space<vmem>>, %arg4: memref<128x128xf32, #tpu.memory_space<vmem>>, %arg5: memref<1x128xf32, #tpu.memory_space<vmem>>, %arg6: memref<8x128xf32, #tpu.memory_space<vmem>>) attributes {dimension_semantics = [#tpu.dimension_semantics<parallel>], iteration_bounds = array<i64: 1>, scalar_prefetch = 0 : i64, scratch_operands = 0 : i64, tpu.core_type = #tpu.core_type<tc>, window_params = [{transform_indices = @transform_0, window_bounds = array<i64: 8, 8>}, {pipeline_mode = #tpu.pipeline_mode<synchronous>, transform_indices = @transform_1, window_bounds = array<i64: 8, 128>}, {pipeline_mode = #tpu.pipeline_mode<synchronous>, transform_indices = @transform_2, window_bounds = array<i64: 1, 128>}, {pipeline_mode = #tpu.pipeline_mode<synchronous>, transform_indices = @transform_3, window_bounds = array<i64: 128, 128>}, {pipeline_mode = #tpu.pipeline_mode<synchronous>, transform_indices = @transform_4, window_bounds = array<i64: 1, 128>}, {transform_indices = @transform_5, window_bounds = array<i64: 8, 128>}]} {
    %c0 = arith.constant 0 : index
    %c0_0 = arith.constant 0 : index
    %0 = vector.load %arg1[%c0, %c0_0] : memref<8x8xf32, #tpu.memory_space<vmem>>, vector<8x8xf32>
    %c0_1 = arith.constant 0 : index
    %c0_2 = arith.constant 0 : index
    %1 = vector.load %arg2[%c0_1, %c0_2] : memref<8x128xf32, #tpu.memory_space<vmem>>, vector<8x128xf32>
    %c0_3 = arith.constant 0 : index
    %c0_4 = arith.constant 0 : index
    %2 = vector.load %arg3[%c0_3, %c0_4] : memref<1x128xf32, #tpu.memory_space<vmem>>, vector<1x128xf32>
    %cst = arith.constant dense<0.000000e+00> : vector<8x128xf32>
    %3 = tpu.matmul %0, %1, %cst {dimension_numbers = #tpu.dot_dimension_numbers<[1], [0], [0], [1], [0, 0, 1, 1], [], []>} : vector<8x8xf32>, vector<8x128xf32>, vector<8x128xf32> -> vector<8x128xf32>
    %4 = vector.broadcast %2 : vector<1x128xf32> to vector<8x128xf32>
    %5 = arith.addf %3, %4 : vector<8x128xf32>
    %cst_5 = arith.constant 0.000000e+00 : f32
    %6 = vector.broadcast %cst_5 : f32 to vector<8x128xf32>
    %7 = arith.maximumf %5, %6 : vector<8x128xf32>
    %c0_6 = arith.constant 0 : index
    %c0_7 = arith.constant 0 : index
    %8 = vector.load %arg4[%c0_6, %c0_7] : memref<128x128xf32, #tpu.memory_space<vmem>>, vector<128x128xf32>
    %c0_8 = arith.constant 0 : index
    %c0_9 = arith.constant 0 : index
    %9 = vector.load %arg5[%c0_8, %c0_9] : memref<1x128xf32, #tpu.memory_space<vmem>>, vector<1x128xf32>
    %cst_10 = arith.constant dense<0.000000e+00> : vector<8x128xf32>
    %10 = tpu.matmul %7, %8, %cst_10 {dimension_numbers = #tpu.dot_dimension_numbers<[1], [0], [0], [1], [0, 0, 1, 1], [], []>} : vector<8x128xf32>, vector<128x128xf32>, vector<8x128xf32> -> vector<8x128xf32>
    %11 = vector.broadcast %9 : vector<1x128xf32> to vector<8x128xf32>
    %12 = arith.addf %10, %11 : vector<8x128xf32>
    %c0_11 = arith.constant 0 : index
    %c0_12 = arith.constant 0 : index
    %13 = vector.load %arg6[%c0_11, %c0_12] : memref<8x128xf32, #tpu.memory_space<vmem>>, vector<8x128xf32>
    tpu.vector_store %arg6[%c0_11, %c0_12], %12 {strides = array<i32>} : memref<8x128xf32, #tpu.memory_space<vmem>>, vector<8x128xf32>,
    return
  }
  func.func @transform_0(%arg0: i32) -> (i32, i32) {
    %c0_i32 = arith.constant 0 : i32
    %c0_i32_0 = arith.constant 0 : i32
    return %arg0, %c0_i32 : i32, i32
  }
  func.func @transform_1(%arg0: i32) -> (i32, i32) {
    %c0_i32 = arith.constant 0 : i32
    %c0_i32_0 = arith.constant 0 : i32
    %c0_i32_1 = arith.constant 0 : i32
    return %c0_i32, %c0_i32_0 : i32, i32
  }
  func.func @transform_2(%arg0: i32) -> (i32, i32) {
    %c0_i32 = arith.constant 0 : i32
    %c0_i32_0 = arith.constant 0 : i32
    %c0_i32_1 = arith.constant 0 : i32
    return %c0_i32, %c0_i32_0 : i32, i32
  }
  func.func @transform_3(%arg0: i32) -> (i32, i32) {
    %c0_i32 = arith.constant 0 : i32
    %c0_i32_0 = arith.constant 0 : i32
    %c0_i32_1 = arith.constant 0 : i32
    return %c0_i32, %c0_i32_0 : i32, i32
  }
  func.func @transform_4(%arg0: i32) -> (i32, i32) {
    %c0_i32 = arith.constant 0 : i32
    %c0_i32_0 = arith.constant 0 : i32
    %c0_i32_1 = arith.constant 0 : i32
    return %c0_i32, %c0_i32_0 : i32, i32
  }
  func.func @transform_5(%arg0: i32) -> (i32, i32) {
    %c0_i32 = arith.constant 0 : i32
    %c0_i32_0 = arith.constant 0 : i32
    return %arg0, %c0_i32 : i32, i32
  }
}

</mosaic_0001>

<llo_original>
// kernel: tpu_custom_call.1
$region0: #{tpu_custom_call.1}
  #allocation0 [shape = 'u32[]', space=smem, size = 0x4, offset = 0x4, fixed_abs, tag = 'smem constant byte address 0x4 - core index']
  #allocation1 [shape = 'u32[72,128]{1,0:T(1,128)}', space=vmem, size = 0x9000, scoped, tag = 'internal scratch']
  %s0 = inlined_call_operand.hbm [shape: f32[8,8], index: 0, kind: input, shape index: {}]
  %s1 = inlined_call_operand.hbm [shape: f32[8,128], index: 1, kind: input, shape index: {}]
  %s2 = inlined_call_operand.vmem [shape: f32[1,128], index: 2, kind: input, shape index: {}]
  %s3 = inlined_call_operand.hbm [shape: f32[128,128], index: 3, kind: input, shape index: {}]
  %s4 = inlined_call_operand.vmem [shape: f32[1,128], index: 4, kind: input, shape index: {}]
  %s5 = inlined_call_operand.hbm [shape: f32[8,128], index: 5, kind: output, shape index: {}]
  %s6 = sld [smem:[#allocation0]]
  $region42: #{tpu_custom_call.1} parent=0
    _
  %s8 = ssub.s32 1, %s6
  %s9 = scalar_select 0, %s8, %s6
  $region1: #{tpu_custom_call.1} parent=0
    #allocation2 [shape = 'u8[4096]{0}', space=vmem, size = 0x1000, scoped, tag = 'input window, operand 0, single buffered']
    #allocation3 [shape = 's32[1]{0}', space=sflag, size = 0x4, scoped, tag = 'scoped memory for tpu_custom_call.1']
    #allocation4 [shape = 's32[1]{0}', space=sflag, size = 0x4, scoped, tag = 'scoped memory for tpu_custom_call.1']
    #allocation5 [shape = 'u8[4096]{0}', space=vmem, size = 0x1000, scoped, tag = 'input window, operand 1, single buffered']
    #allocation6 [shape = 's32[1]{0}', space=sflag, size = 0x4, scoped, tag = 'scoped memory for tpu_custom_call.1']
    #allocation7 [shape = 'u8[65536]{0}', space=vmem, size = 0x10000, scoped, tag = 'input window, operand 3, single buffered']
    #allocation8 [shape = 'u8[4096]{0}', space=vmem, size = 0x1000, scoped, tag = 'output window, operand 0, single buffered']
    %10 = vsyncpa [#allocation3], 0
    %11 = vsyncpa [#allocation6], 0
    %12 = vsyncpa [#allocation4], 0
    // Predicated region
    $region2: #{tpu_custom_call.1} parent=1 // pred_check
      _
    $region3: #{tpu_custom_call.1} parent=1 // pred_check_branch
      %14 = sbr.rel (0) target = $region5
    $region4: #{tpu_custom_call.1} parent=1 // pred_region
      %16 = vsyncadd [#allocation3], 0
      %s18 = sshll.u32 %s0, 4
      %s19 = int_to_ptr.hbm [resolvable:$true] %s18
      %s20 = sshll.u32 [#allocation2], 4
      %s21 = int_to_ptr.vmem [resolvable:$true] %s20
      %23 = dma.hbm_to_vmem [thread:$0]  %s19, 128, %s21, [#allocation3]
    $region5: #{tpu_custom_call.1} parent=1 // pred_fallthru
      _
    // Predicated region
    $region6: #{tpu_custom_call.1} parent=1 // pred_check
      _
    $region7: #{tpu_custom_call.1} parent=1 // pred_check_branch
      %25 = sbr.rel (0) target = $region9
    $region8: #{tpu_custom_call.1} parent=1 // pred_region
      %27 = vsyncadd [#allocation6], 0
      %s29 = sshll.u32 %s1, 4
      %s30 = int_to_ptr.hbm [resolvable:$true] %s29
      %s31 = sshll.u32 [#allocation5], 4
      %s32 = int_to_ptr.vmem [resolvable:$true] %s31
      %34 = dma.hbm_to_vmem [thread:$0]  %s30, 128, %s32, [#allocation6]
    $region9: #{tpu_custom_call.1} parent=1 // pred_fallthru
      _
    // Predicated region
    $region10: #{tpu_custom_call.1} parent=1 // pred_check
      _
    $region11: #{tpu_custom_call.1} parent=1 // pred_check_branch
      %36 = sbr.rel (0) target = $region13
    $region12: #{tpu_custom_call.1} parent=1 // pred_region
      _
    $region13: #{tpu_custom_call.1} parent=1 // pred_fallthru
      _
    // Predicated region
    $region14: #{tpu_custom_call.1} parent=1 // pred_check
      _
    $region15: #{tpu_custom_call.1} parent=1 // pred_check_branch
      %38 = sbr.rel (0) target = $region17
    $region16: #{tpu_custom_call.1} parent=1 // pred_region
      %40 = vsyncadd [#allocation6], 0
      %s41 = sshll.u32 %s3, 4
      %s42 = int_to_ptr.hbm [resolvable:$true] %s41
      %s43 = sshll.u32 [#allocation7], 4
      %s44 = int_to_ptr.vmem [resolvable:$true] %s43
      %49 = dma.hbm_to_vmem [thread:$0]  %s42, 2048, %s44, [#allocation6], 128, 128, 8
    $region17: #{tpu_custom_call.1} parent=1 // pred_fallthru
      _
    // Predicated region
    $region18: #{tpu_custom_call.1} parent=1 // pred_check
      _
    $region19: #{tpu_custom_call.1} parent=1 // pred_check_branch
      %51 = sbr.rel (0) target = $region21
    $region20: #{tpu_custom_call.1} parent=1 // pred_region
      _
    $region21: #{tpu_custom_call.1} parent=1 // pred_fallthru
      _
    // Predicated region
    $region22: #{tpu_custom_call.1} parent=1 // pred_check
      _
    $region23: #{tpu_custom_call.1} parent=1 // pred_check_branch
      %53 = sbr.rel (0) target = $region25
    $region24: #{tpu_custom_call.1} parent=1 // pred_region
      %55 = dma.done [#allocation3], 128
    $region25: #{tpu_custom_call.1} parent=1 // pred_fallthru
      _
    // Predicated region
    $region26: #{tpu_custom_call.1} parent=1 // pred_check
      _
    $region27: #{tpu_custom_call.1} parent=1 // pred_check_branch
      %57 = sbr.rel (0) target = $region29
    $region28: #{tpu_custom_call.1} parent=1 // pred_region
      %59 = dma.done [#allocation6], 128
    $region29: #{tpu_custom_call.1} parent=1 // pred_fallthru
      _
    // Predicated region
    $region30: #{tpu_custom_call.1} parent=1 // pred_check
      _
    $region31: #{tpu_custom_call.1} parent=1 // pred_check_branch
      %61 = sbr.rel (0) target = $region33
    $region32: #{tpu_custom_call.1} parent=1 // pred_region
      %63 = dma.done [#allocation6], 2048
    $region33: #{tpu_custom_call.1} parent=1 // pred_fallthru
      _
    %v64 = vld [vmem:[#allocation2] sm:$0xff]
    %v65 = vld [vmem:[#allocation5] sm:$0xff]
    %v66 = vld [vmem:[%s2] sm:$0x1]
    %v68 = vperm.slane %v66, 0
    %vm70 = vcmask 64512
    %v72 = vsel %vm70, %v64, 0
    %74 = vmatpush.msra.mxu0 0.0
    %75 = vmatpush.msra.mxu0 0.0
    %76 = vmatpush.msra.mxu0 0.0
    %77 = vmatpush.msra.mxu0 0.0
    %78 = vmatpush.msra.mxu0 0.0
    %79 = vmatpush.msra.mxu0 0.0
    %80 = vmatpush.msra.mxu0 0.0
    %81 = vmatpush.msra.mxu0 0.0
    %82 = vmatpush.msra.mxu0 0.0
    %83 = vmatpush.msra.mxu0 0.0
    %84 = vmatpush.msra.mxu0 0.0
    %85 = vmatpush.msra.mxu0 0.0
    %86 = vmatpush.msra.mxu0 0.0
    %87 = vmatpush.msra.mxu0 0.0
    %88 = vmatpush.msra.mxu0 0.0
    %89 = vmatpush.msra.mxu0 %v65
    %90 = vmatmul.f32.gmra.mxu0 %v72
    %v91 = vpop.f32.mrf.mxu0
    %v92 = vadd.f32 %v68, %v91
    %93 = vdwg.mxu0
    %v94 = vmax.f32 %v92, 0.0
    %v95 = vld [vmem:[#allocation7] sm:$0xff]
    %v96 = vld [vmem:[#allocation7 + $0x8] sm:$0xff]
    %v97 = vld [vmem:[#allocation7 + $0x10] sm:$0xff]
    %v98 = vld [vmem:[#allocation7 + $0x18] sm:$0xff]
    %v99 = vld [vmem:[#allocation7 + $0x20] sm:$0xff]
    %v100 = vld [vmem:[#allocation7 + $0x28] sm:$0xff]
    %v101 = vld [vmem:[#allocation7 + $0x30] sm:$0xff]
    %v102 = vld [vmem:[#allocation7 + $0x38] sm:$0xff]
    %v103 = vld [vmem:[#allocation7 + $0x40] sm:$0xff]
    %v104 = vld [vmem:[#allocation7 + $0x48] sm:$0xff]
    %v105 = vld [vmem:[#allocation7 + $0x50] sm:$0xff]
    %v106 = vld [vmem:[#allocation7 + $0x58] sm:$0xff]
    %v107 = vld [vmem:[#allocation7 + $0x60] sm:$0xff]
    %v108 = vld [vmem:[#allocation7 + $0x68] sm:$0xff]
    %v109 = vld [vmem:[#allocation7 + $0x70] sm:$0xff]
    %v110 = vld [vmem:[#allocation7 + $0x78] sm:$0xff]
    %v111 = vld [vmem:[%s4] sm:$0x1]
    %v113 = vperm.slane %v111, 0
    %115 = vmatpush.msra.mxu0 %v110
    %116 = vmatpush.msra.mxu0 %v109
    %117 = vmatpush.msra.mxu0 %v108
    %118 = vmatpush.msra.mxu0 %v107
    %119 = vmatpush.msra.mxu0 %v106
    %120 = vmatpush.msra.mxu0 %v105
    %121 = vmatpush.msra.mxu0 %v104
    %122 = vmatpush.msra.mxu0 %v103
    %123 = vmatpush.msra.mxu0 %v102
    %124 = vmatpush.msra.mxu0 %v101
    %125 = vmatpush.msra.mxu0 %v100
    %126 = vmatpush.msra.mxu0 %v99
    %127 = vmatpush.msra.mxu0 %v98
    %128 = vmatpush.msra.mxu0 %v97
    %129 = vmatpush.msra.mxu0 %v96
    %130 = vmatpush.msra.mxu0 %v95
    %131 = vmatmul.f32.gmra.mxu0 %v94
    %v132 = vpop.f32.mrf.mxu0
    %v133 = vadd.f32 %v113, %v132
    %134 = vdwg.mxu0
    %135 = vst [vmem:[#allocation8] sm:$0xff] %v133
    // Predicated region
    $region34: #{tpu_custom_call.1} parent=1 // pred_check
      _
    $region35: #{tpu_custom_call.1} parent=1 // pred_check_branch
      %137 = sbr.rel (0) target = $region37
    $region36: #{tpu_custom_call.1} parent=1 // pred_region
      %139 = vsyncadd [#allocation4], 0
      %s141 = sshll.u32 [#allocation8], 4
      %s142 = int_to_ptr.vmem [resolvable:$true] %s141
      %s143 = sshll.u32 %s5, 4
      %s144 = int_to_ptr.hbm [resolvable:$true] %s143
      %146 = dma.vmem_to_hbm [thread:$0]  %s142, 128, %s144, [#allocation4]
    $region37: #{tpu_custom_call.1} parent=1 // pred_fallthru
      _
    // Predicated region
    $region38: #{tpu_custom_call.1} parent=1 // pred_check
      _
    $region39: #{tpu_custom_call.1} parent=1 // pred_check_branch
      %148 = sbr.rel (0) target = $region41
    $region40: #{tpu_custom_call.1} parent=1 // pred_region
      %150 = dma.done [#allocation4], 128
    $region41: #{tpu_custom_call.1} parent=1 // pred_fallthru
      _
    %151 = vsyncpa [#allocation3], 1
    %152 = vsyncpa [#allocation6], 1
    %153 = vsyncpa [#allocation4], 1

</llo_original>
